<compile_context>
chip_gen: v6e
topology: v6e:2x2x1
jax: 0.10.0
libtpu: 0.0.40
codegen_flags: <defaults>
</compile_context>

<pallas_src>
import math

import jax
import jax.numpy as jnp
from jax.experimental import pallas as pl
from jax.experimental.pallas import tpu as pltpu


def _round_up(x, m):
    return ((x + m - 1) // m) * m


def _tpu_generation():
    try:
        kind = jax.devices()[0].device_kind.lower()
    except Exception:
        return "unknown"
    if "v7" in kind:
        return "v7x"
    if "v6" in kind:
        return "v6e"
    if "v5" in kind:
        return "v5e"
    return "unknown"


def _select_config():
    """Per-generation (row tile, hidden tile, VMEM cap)."""
    gen = _tpu_generation()
    if gen == "v6e":
        # 128 MiB physical VMEM, ~1.4 TB/s HBM: tm=1024 makes each weight byte reused
        # ~1024x (>~655 FLOP/B ridge) and fully hides the weight-slab DMA.
        return gen, 1024, 512, 110 << 20
    if gen == "v7x":
        # 64 MiB/TC VMEM: th=256 halves the double-buffered W slabs, tm=768 clears the
        # ~620 FLOP/B per-TC ridge; leave headroom below the 64 MiB limit.
        return gen, 768, 256, 56 << 20
    if gen == "v5e":
        # ~240 FLOP/B ridge: tm=512 is comfortably MXU-bound; 128 MiB physical VMEM.
        return gen, 512, 512, 100 << 20
    return gen, 512, 512, 64 << 20


def ffn_kernel(x_ref, w1_ref, b1_ref, w2_ref, b2_ref, o_ref, acc_ref):
    # x_ref: (tm, D)   w1_ref: (D, th)   b1_ref: (n_k, th) resident
    # w2_ref: (th, D)  b2_ref: (1, D)    o_ref: (tm, D)    acc_ref: (tm, D) f32
    k = pl.program_id(1)

    @pl.when(k == 0)
    def _init():
        # Seed the accumulator with the second bias (added exactly once).
        acc_ref[...] = jnp.broadcast_to(
            b2_ref[...].astype(jnp.float32), acc_ref.shape)

    # First linear: native-dtype operands on the MXU, f32 accumulation.
    h = jnp.dot(x_ref[...], w1_ref[...], preferred_element_type=jnp.float32)
    # b1 is resident; pick this k-step's slab without a per-step DMA.
    h = h + b1_ref[pl.ds(k, 1), :].astype(jnp.float32)

    # Exact (erf-based) GELU in f32, matching PyTorch nn.GELU() default.
    h = 0.5 * h * (1.0 + jax.lax.erf(h * (1.0 / math.sqrt(2.0))))
    # Dropout(p=0.0) is the identity -> nothing to do.

    # Second linear: cast the activation to the weight dtype so the MXU runs at native
    # rate (no-op when weights are f32), accumulate in f32.
    acc_ref[...] += jnp.dot(h.astype(w2_ref.dtype), w2_ref[...],
                            preferred_element_type=jnp.float32)

    @pl.when(k == pl.num_programs(1) - 1)
    def _finalize():
        o_ref[...] = acc_ref[...].astype(o_ref.dtype)


def feed_forward(x, w1, b1, w2, b2, *, tm=None, th=None):
    """x: (..., D). Returns the same shape/dtype as x."""
    orig_shape = x.shape
    orig_dtype = x.dtype
    D = orig_shape[-1]
    x2 = x.reshape(-1, D)
    M = x2.shape[0]
    H = w1.shape[1]

    # Lane-dense feature dims keep stores unmasked and satisfy the (8, 128) constraint.
    # (On v6e, D/H as multiples of 256 use the full 2x256x256 MXU; 128 is the hard floor.)
    assert D % 128 == 0, "model dim must be a multiple of 128 (pad the model dim)"
    assert H % 128 == 0, "hidden dim must be a multiple of 128 (pad the hidden dim)"

    # Dtype policy: cast activations ONCE here to the weight dtype so every MXU step sees
    # native-dtype operands (no silent f32 promotion in the kernel). f32 acc is kept inside.
    compute_dtype = w1.dtype
    if x2.dtype != compute_dtype:
        x2 = x2.astype(compute_dtype)
    if w2.dtype != compute_dtype:
        w2 = w2.astype(compute_dtype)

    itemsize = jnp.dtype(compute_dtype).itemsize
    out_itemsize = jnp.dtype(orig_dtype).itemsize
    # Sublane packing granularity: f32 -> 8 rows, bf16 -> 16, int8/fp8 -> 32.
    pack = max(8, 32 // itemsize)

    gen, tm_auto, th_auto, vmem_cap = _select_config()
    if tm is None:
        tm = tm_auto
    if th is None:
        th = th_auto

    # Hidden-dim reduction tile: multiple of 128 that divides H.
    th = max(128, (min(th, H) // 128) * 128)
    while H % th != 0:
        th -= 128
    n_k = H // th

    # Row tile: as large as useful (arithmetic-intensity knob), aligned to the packing
    # granularity, never larger than the (padded) token count.
    m_pack = _round_up(M, pack)
    tm = max(pack, min(_round_up(tm, pack), m_pack))
    # v7x has 2 TensorCores; the "parallel" row axis is sharded across them, so keep
    # at least two row tiles when there are enough rows.
    if gen == "v7x" and m_pack >= 2 * pack:
        tm = min(tm, max(pack, (m_pack // 2) // pack * pack))

    def _footprint(tm_):
        return (2 * tm_ * D * itemsize          # x row tile (double-buffered)
                + 2 * D * th * itemsize         # W1 hidden slab (double-buffered)
                + 2 * th * D * itemsize         # W2 hidden slab (double-buffered)
                + 2 * (H + D) * itemsize        # resident b1 + b2 (tiny)
                + 2 * tm_ * D * out_itemsize    # output row tile
                + tm_ * D * 4)                  # f32 accumulator scratch

    # Shrink tm (not th) until the footprint fits the per-generation VMEM budget; this also
    # covers the large-D case where the f32 accumulator becomes the limiter.
    while _footprint(tm) > int(vmem_cap * 0.9) and tm > pack:
        tm = max(pack, _round_up(tm // 2, pack))

    m_pad = _round_up(M, tm)
    if m_pad != M:
        # Only hit when M is not a multiple of tm (rare at transformer scale; < tm rows).
        # TODO(synk): handle the ragged last row tile in-kernel to avoid this extra HBM pass.
        x2 = jnp.pad(x2, ((0, m_pad - M), (0, 0)))

    grid = (m_pad // tm, n_k)
    vmem_limit = int(min(vmem_cap,
                         max(32 << 20, int(_footprint(tm) * 1.2) + (2 << 20))))

    b1_r = b1.reshape(n_k, th).astype(compute_dtype)   # resident bias table
    b2_r = b2.reshape(1, D).astype(compute_dtype)

    out = pl.pallas_call(
        ffn_kernel,
        out_shape=jax.ShapeDtypeStruct((m_pad, D), orig_dtype),
        grid_spec=pltpu.PrefetchScalarGridSpec(
            num_scalar_prefetch=0,
            grid=grid,
            in_specs=[
                pl.BlockSpec((tm, D), lambda i, k: (i, 0)),      # x row tile
                pl.BlockSpec((D, th), lambda i, k: (0, k)),      # W1 hidden slab
                pl.BlockSpec((n_k, th), lambda i, k: (0, 0)),    # b1: resident, sliced in-kernel
                pl.BlockSpec((th, D), lambda i, k: (k, 0)),      # W2 hidden slab
                pl.BlockSpec((1, D), lambda i, k: (0, 0)),       # b2: grid-constant
            ],
            out_specs=pl.BlockSpec((tm, D), lambda i, k: (i, 0)),
            scratch_shapes=[pltpu.VMEM((tm, D), jnp.float32)],
        ),
        compiler_params=pltpu.CompilerParams(
            dimension_semantics=("parallel", "arbitrary"),
            vmem_limit_bytes=vmem_limit,
        ),
    )(x2, w1, b1_r, w2, b2_r)

    return out[:M].reshape(orig_shape)


def init_params(key, dim, hidden_dim, dtype=jnp.float32):
    # Deterministic init mimicking nn.Linear's U(-1/sqrt(fan_in), 1/sqrt(fan_in)).
    k1, k2, k3, k4 = jax.random.split(key, 4)
    bound1 = 1.0 / math.sqrt(dim)
    bound2 = 1.0 / math.sqrt(hidden_dim)
    w1 = jax.random.uniform(k1, (dim, hidden_dim), dtype, -bound1, bound1)
    b1 = jax.random.uniform(k2, (1, hidden_dim), dtype, -bound1, bound1)
    w2 = jax.random.uniform(k3, (hidden_dim, dim), dtype, -bound2, bound2)
    b2 = jax.random.uniform(k4, (1, dim), dtype, -bound2, bound2)
    return w1, b1, w2, b2


def _reference(x, w1, b1, w2, b2):
    # Pure-JAX f32 reference (GELU exact, dropout p=0 -> identity).
    xf = x.reshape(-1, x.shape[-1]).astype(jnp.float32)
    h = xf @ w1.astype(jnp.float32) + b1.astype(jnp.float32)
    h = 0.5 * h * (1.0 + jax.lax.erf(h / math.sqrt(2.0)))
    y = h @ w2.astype(jnp.float32) + b2.astype(jnp.float32)
    return y.reshape(x.shape)


if __name__ == "__main__":
    # Small, lane-dense shapes consistent with the module (token tensor (B, S, dim));
    # hidden = 4 * dim so the k (reduction) grid axis is exercised on every generation.
    B, S, DIM, HIDDEN = 4, 8, 256, 1024
    key = jax.random.PRNGKey(0)
    kx, kp = jax.random.split(key)
    x = jax.random.normal(kx, (B, S, DIM), jnp.float32)
    w1, b1, w2, b2 = init_params(kp, DIM, HIDDEN)

    ref = _reference(x, w1, b1, w2, b2)

    # f32 path with auto per-generation tiling.
    out = jax.block_until_ready(feed_forward(x, w1, b1, w2, b2))
    assert jnp.allclose(out, ref, atol=1e-4, rtol=1e-4), "f32 mismatch vs reference"

    # bf16 path (wrapper casts activations once; f32 accumulator kept in-kernel) with a
    # small tm override so the row-tile grid axis has multiple tiles.
    xb = x.astype(jnp.bfloat16)
    w1b, b1b, w2b, b2b = (p.astype(jnp.bfloat16) for p in (w1, b1, w2, b2))
    out_b = jax.block_until_ready(feed_forward(xb, w1b, b1b, w2b, b2b, tm=16))
    assert jnp.allclose(out_b.astype(jnp.float32), ref, atol=5e-2, rtol=5e-2), \
        "bf16 mismatch vs reference"

    print("KERNEL_OK")
</pallas_src>

<mosaic_0001>
module attributes {stable_mosaic.version = 11 : i64} {
  func.func @ffn_kernel(%arg0: i32, %arg1: i32, %arg2: memref<32x256xf32, #tpu.memory_space<vmem>>, %arg3: memref<256x512xf32, #tpu.memory_space<vmem>>, %arg4: memref<2x512xf32, #tpu.memory_space<vmem>>, %arg5: memref<512x256xf32, #tpu.memory_space<vmem>>, %arg6: memref<1x256xf32, #tpu.memory_space<vmem>>, %arg7: memref<32x256xf32, #tpu.memory_space<vmem>>, %arg8: memref<32x256xf32, #tpu.memory_space<vmem>>) attributes {dimension_semantics = [#tpu.dimension_semantics<parallel>, #tpu.dimension_semantics<arbitrary>], iteration_bounds = array<i64: 1, 2>, scalar_prefetch = 0 : i64, scratch_operands = 1 : i64, tpu.core_type = #tpu.core_type<tc>, window_params = [{transform_indices = @transform_0, window_bounds = array<i64: 32, 256>}, {transform_indices = @transform_1, window_bounds = array<i64: 256, 512>}, {pipeline_mode = #tpu.pipeline_mode<synchronous>, transform_indices = @transform_2, window_bounds = array<i64: 2, 512>}, {transform_indices = @transform_3, window_bounds = array<i64: 512, 256>}, {pipeline_mode = #tpu.pipeline_mode<synchronous>, transform_indices = @transform_4, window_bounds = array<i64: 1, 256>}, {transform_indices = @transform_5, window_bounds = array<i64: 32, 256>}]} {
    %c0_i32 = arith.constant 0 : i32
    %0 = arith.cmpi eq, %arg1, %c0_i32 : i32
    %1 = arith.extui %0 : i1 to i32
    %c0_i32_0 = arith.constant 0 : i32
    %2 = arith.cmpi ne, %1, %c0_i32_0 : i32
    scf.if %2 {
      %c0_16 = arith.constant 0 : index
      %c0_17 = arith.constant 0 : index
      %26 = vector.load %arg6[%c0_16, %c0_17] : memref<1x256xf32, #tpu.memory_space<vmem>>, vector<1x256xf32>
      %27 = vector.shape_cast %26 : vector<1x256xf32> to vector<1x256xf32>
      %28 = vector.broadcast %27 : vector<1x256xf32> to vector<32x256xf32>
      %c0_18 = arith.constant 0 : index
      %c0_19 = arith.constant 0 : index
      %29 = vector.load %arg8[%c0_18, %c0_19] : memref<32x256xf32, #tpu.memory_space<vmem>>, vector<32x256xf32>
      tpu.vector_store %arg8[%c0_18, %c0_19], %28 {strides = array<i32>} : memref<32x256xf32, #tpu.memory_space<vmem>>, vector<32x256xf32>,
    } else {
    }
    %c0 = arith.constant 0 : index
    %c0_1 = arith.constant 0 : index
    %3 = vector.load %arg2[%c0, %c0_1] : memref<32x256xf32, #tpu.memory_space<vmem>>, vector<32x256xf32>
    %c0_2 = arith.constant 0 : index
    %c0_3 = arith.constant 0 : index
    %4 = vector.load %arg3[%c0_2, %c0_3] : memref<256x512xf32, #tpu.memory_space<vmem>>, vector<256x512xf32>
    %cst = arith.constant dense<0.000000e+00> : vector<32x512xf32>
    %5 = tpu.matmul %3, %4, %cst {dimension_numbers = #tpu.dot_dimension_numbers<[1], [0], [0], [1], [0, 0, 1, 1], [], []>} : vector<32x256xf32>, vector<256x512xf32>, vector<32x512xf32> -> vector<32x512xf32>
    %6 = arith.index_cast %arg1 : i32 to index
    %c0_4 = arith.constant 0 : index
    %7 = vector.load %arg4[%6, %c0_4] : memref<2x512xf32, #tpu.memory_space<vmem>>, vector<1x512xf32>
    %8 = vector.broadcast %7 : vector<1x512xf32> to vector<32x512xf32>
    %9 = arith.addf %5, %8 : vector<32x512xf32>
    %cst_5 = arith.constant 5.000000e-01 : f32
    %10 = vector.broadcast %cst_5 : f32 to vector<32x512xf32>
    %11 = arith.mulf %10, %9 : vector<32x512xf32>
    %cst_6 = arith.constant 0.707106769 : f32
    %12 = vector.broadcast %cst_6 : f32 to vector<32x512xf32>
    %13 = arith.mulf %9, %12 : vector<32x512xf32>
    %14 = math.erf %13 : vector<32x512xf32>
    %cst_7 = arith.constant 1.000000e+00 : f32
    %15 = vector.broadcast %cst_7 : f32 to vector<32x512xf32>
    %16 = arith.addf %15, %14 : vector<32x512xf32>
    %17 = arith.mulf %11, %16 : vector<32x512xf32>
    %c0_8 = arith.constant 0 : index
    %c0_9 = arith.constant 0 : index
    %18 = vector.load %arg8[%c0_8, %c0_9] : memref<32x256xf32, #tpu.memory_space<vmem>>, vector<32x256xf32>
    %c0_10 = arith.constant 0 : index
    %c0_11 = arith.constant 0 : index
    %19 = vector.load %arg5[%c0_10, %c0_11] : memref<512x256xf32, #tpu.memory_space<vmem>>, vector<512x256xf32>
    %cst_12 = arith.constant dense<0.000000e+00> : vector<32x256xf32>
    %20 = tpu.matmul %17, %19, %cst_12 {dimension_numbers = #tpu.dot_dimension_numbers<[1], [0], [0], [1], [0, 0, 1, 1], [], []>} : vector<32x512xf32>, vector<512x256xf32>, vector<32x256xf32> -> vector<32x256xf32>
    %21 = arith.addf %18, %20 : vector<32x256xf32>
    %c0_13 = arith.constant 0 : index
    %c0_14 = arith.constant 0 : index
    %22 = vector.load %arg8[%c0_13, %c0_14] : memref<32x256xf32, #tpu.memory_space<vmem>>, vector<32x256xf32>
    tpu.vector_store %arg8[%c0_13, %c0_14], %21 {strides = array<i32>} : memref<32x256xf32, #tpu.memory_space<vmem>>, vector<32x256xf32>,
    %c1_i32 = arith.constant 1 : i32
    %23 = arith.cmpi eq, %arg1, %c1_i32 : i32
    %24 = arith.extui %23 : i1 to i32
    %c0_i32_15 = arith.constant 0 : i32
    %25 = arith.cmpi ne, %24, %c0_i32_15 : i32
    scf.if %25 {
      %c0_16 = arith.constant 0 : index
      %c0_17 = arith.constant 0 : index
      %26 = vector.load %arg8[%c0_16, %c0_17] : memref<32x256xf32, #tpu.memory_space<vmem>>, vector<32x256xf32>
      %c0_18 = arith.constant 0 : index
      %c0_19 = arith.constant 0 : index
      %27 = vector.load %arg7[%c0_18, %c0_19] : memref<32x256xf32, #tpu.memory_space<vmem>>, vector<32x256xf32>
      tpu.vector_store %arg7[%c0_18, %c0_19], %26 {strides = array<i32>} : memref<32x256xf32, #tpu.memory_space<vmem>>, vector<32x256xf32>,
    } else {
    }
    return
  }
  func.func @transform_0(%arg0: i32, %arg1: i32) -> (i32, i32) {
    %c0_i32 = arith.constant 0 : i32
    %c0_i32_0 = arith.constant 0 : i32
    return %arg0, %c0_i32 : i32, i32
  }
  func.func @transform_1(%arg0: i32, %arg1: i32) -> (i32, i32) {
    %c0_i32 = arith.constant 0 : i32
    %c0_i32_0 = arith.constant 0 : i32
    return %c0_i32, %arg1 : i32, i32
  }
  func.func @transform_2(%arg0: i32, %arg1: i32) -> (i32, i32) {
    %c0_i32 = arith.constant 0 : i32
    %c0_i32_0 = arith.constant 0 : i32
    %c0_i32_1 = arith.constant 0 : i32
    return %c0_i32, %c0_i32_0 : i32, i32
  }
  func.func @transform_3(%arg0: i32, %arg1: i32) -> (i32, i32) {
    %c0_i32 = arith.constant 0 : i32
    %c0_i32_0 = arith.constant 0 : i32
    return %arg1, %c0_i32 : i32, i32
  }
  func.func @transform_4(%arg0: i32, %arg1: i32) -> (i32, i32) {
    %c0_i32 = arith.constant 0 : i32
    %c0_i32_0 = arith.constant 0 : i32
    %c0_i32_1 = arith.constant 0 : i32
    return %c0_i32, %c0_i32_0 : i32, i32
  }
  func.func @transform_5(%arg0: i32, %arg1: i32) -> (i32, i32) {
    %c0_i32 = arith.constant 0 : i32
    %c0_i32_0 = arith.constant 0 : i32
    return %arg0, %c0_i32 : i32, i32
  }
}

</mosaic_0001>

<llo_original>
// kernel: tpu_custom_call.1
$region0: #{tpu_custom_call.1}
  #allocation0 [shape = 'u32[]', space=smem, size = 0x4, offset = 0x4, fixed_abs, tag = 'smem constant byte address 0x4 - core index']
  #allocation1 [shape = 'u32[144,128]{1,0:T(1,128)}', space=vmem, size = 0x12000, scoped, tag = 'internal scratch']
  #allocation2 [shape = 'f32[32,256]{1,0:T(8,128)}', space=vmem, size = 0x8000, scoped, tag = 'scratch operand']
  %s0 = inlined_call_operand.hbm [shape: f32[32,256], index: 0, kind: input, shape index: {}]
  %s1 = inlined_call_operand.hbm [shape: f32[256,1024], index: 1, kind: input, shape index: {}]
  %s2 = inlined_call_operand.hbm [shape: f32[2,512], index: 2, kind: input, shape index: {}]
  %s3 = inlined_call_operand.hbm [shape: f32[1024,256], index: 3, kind: input, shape index: {}]
  %s4 = inlined_call_operand.vmem [shape: f32[1,256], index: 4, kind: input, shape index: {}]
  %s5 = inlined_call_operand.hbm [shape: f32[32,256], index: 5, kind: output, shape index: {}]
  %s6 = sld [smem:[#allocation0]]
  $region77: #{tpu_custom_call.1} parent=0
    _
  %s8 = ssub.s32 1, %s6
  %s9 = scalar_select 0, %s8, %s6
  $region1: #{tpu_custom_call.1} parent=0
    #allocation3 [shape = 'u8[32768]{0}', space=vmem, size = 0x8000, scoped, tag = 'input window, operand 0, single buffered']
    #allocation4 [shape = 's32[2]{0}', space=sflag, size = 0x8, scoped, tag = 'scoped memory for tpu_custom_call.1']
    #allocation5 [shape = 's32[2]{0}', space=sflag, size = 0x8, scoped, tag = 'scoped memory for tpu_custom_call.1']
    #allocation6 [shape = 'u8[1048576]{0}', space=vmem, size = 0x100000, scoped, tag = 'input window, operand 1']
    #allocation7 [shape = 's32[2]{0}', space=sflag, size = 0x8, scoped, tag = 'scoped memory for tpu_custom_call.1']
    #allocation8 [shape = 'u8[4096]{0}', space=vmem, size = 0x1000, scoped, tag = 'input window, operand 2, single buffered']
    #allocation9 [shape = 'u8[1048576]{0}', space=vmem, size = 0x100000, scoped, tag = 'input window, operand 3']
    #allocation10 [shape = 's32[2]{0}', space=sflag, size = 0x8, scoped, tag = 'scoped memory for tpu_custom_call.1']
    #allocation11 [shape = 'u8[32768]{0}', space=vmem, size = 0x8000, scoped, tag = 'output window, operand 0, single buffered']
    %10 = vsyncpa [#allocation4], 0
    %11 = vsyncpa [#allocation7], 0
    %s12 = scalar_lea.sflag [#allocation7], 1
    %13 = vsyncpa %s12, 0
    %14 = vsyncpa [#allocation10], 0
    %s15 = scalar_lea.sflag [#allocation10], 1
    %16 = vsyncpa %s15, 0
    %17 = vsyncpa [#allocation5], 0
    loop: start=0, step=1, limit=4
    $region2: #{tpu_custom_call.1} parent=1 // loop_pre_header
      _
    $region3: #{tpu_custom_call.1} parent=1 // loop_header
      %s19 = sphi 0, %s23
      %p20 = scmp.ge.s32.totalorder %s19, 4
      %s26 = sphi 0, %s38
      %s27 = sphi 0, %s34
      %s28 = sphi 0, %s26
      %s29 = sphi 0, %s27
      %s30 = sphi 0, %s28
      %s31 = sphi 0, %s29
      %s41 = sphi 0, %s43
      %s44 = sphi 0, %s41
      %s45 = sphi 0, %s44
      %s61 = sphi 0, %s45
      %s67 = sphi 0, %s69
      %s70 = sphi 0, %s67
      %s71 = sphi 0, %s70
      %s87 = sphi 0, %s71
      %s91 = sphi 0, %s91
      %s93 = sphi 0, %s91
      %s94 = sphi 0, %s93
      %s108 = sphi 0, %s94
      %s114 = sphi 0, %s116
      %s117 = sphi 0, %s114
      %s118 = sphi 0, %s117
      %s134 = sphi 0, %s118
      %s138 = sphi 0, %s138
      %s140 = sphi 0, %s138
      %s141 = sphi 0, %s140
      %s155 = sphi 0, %s141
      %s161 = sphi 0, %s163
      %s164 = sphi 0, %s161
      %s165 = sphi 0, %s164
      %s181 = sphi 0, %s165
    $region4: #{tpu_custom_call.1} parent=1 // loop_header_branch
      %22 = sbr.rel (%p20) target = $region8
    $region5: #{tpu_custom_call.1} parent=1 // loop_body
      %s24 = ssub.s32 %s19, 1
      %s25 = ssub.s32 %s19, 2
      %s32 = sadd.s32 1, %s27
      %p33 = scmp.ge.s32.totalorder %s32, 2
      %s34 = scalar_select %p33, 0, %s32
      %s35 = sadd.s32 1, %s26
      %s36 = scalar_select %p33, %s35, %s26
      %p37 = scmp.ge.s32.totalorder %s36, 1
      %s38 = scalar_select %p37, 0, %s36
      %s39 = ssub.s32 %s26, %s38
      %p40 = scmp.eq.s32.totalorder %s39, 0
      %s42 = sadd.s32 %s41, 1
      %s43 = scalar_select %p40, %s41, %s42
      %p46 = pneg %p40
      %p47 = scmp.eq.s32.totalorder %s19, 1
      %p48 = por %p46, %p47
      %p49 = scmp.ne.s32.totalorder %s41, %s44
      %p50 = scmp.eq.s32.totalorder %s19, 0
      %p51 = por %p49, %p50
      %p52 = scmp.ne.s32.totalorder %s41, %s44
      %p53 = scmp.eq.s32.totalorder %s24, 1
      %p54 = por %p52, %p53
      %p55 = scmp.ne.s32.totalorder %s44, %s45
      %p56 = scmp.eq.s32.totalorder %s24, 0
      %p57 = por %p55, %p56
      %p58 = scmp.ne.s32.totalorder %s44, %s45
      %p59 = scmp.eq.s32.totalorder %s25, 1
      %p60 = por %p58, %p59
      %p62 = scmp.ne.s32.totalorder %s45, %s61
      %p63 = scmp.eq.s32.totalorder %s25, 0
      %p64 = por %p62, %p63
      %s65 = ssub.s32 %s27, %s34
      %p66 = scmp.eq.s32.totalorder %s65, 0
      %s68 = sadd.s32 %s67, 1
      %s69 = scalar_select %p66, %s67, %s68
      %p72 = pneg %p66
      %p73 = scmp.eq.s32.totalorder %s19, 1
      %p74 = por %p72, %p73
      %p75 = scmp.ne.s32.totalorder %s67, %s70
      %p76 = scmp.eq.s32.totalorder %s19, 0
      %p77 = por %p75, %p76
      %p78 = scmp.ne.s32.totalorder %s67, %s70
      %p79 = scmp.eq.s32.totalorder %s24, 1
      %p80 = por %p78, %p79
      %p81 = scmp.ne.s32.totalorder %s70, %s71
      %p82 = scmp.eq.s32.totalorder %s24, 0
      %p83 = por %p81, %p82
      %p84 = scmp.ne.s32.totalorder %s70, %s71
      %p85 = scmp.eq.s32.totalorder %s25, 1
      %p86 = por %p84, %p85
      %p88 = scmp.ne.s32.totalorder %s71, %s87
      %p89 = scmp.eq.s32.totalorder %s25, 0
      %p90 = por %p88, %p89
      %s92 = sadd.s32 %s91, 1
      %p95 = scmp.eq.s32.totalorder %s19, 1
      %p96 = scmp.ne.s32.totalorder %s91, %s93
      %p97 = scmp.eq.s32.totalorder %s19, 0
      %p98 = por %p96, %p97
      %p99 = scmp.ne.s32.totalorder %s91, %s93
      %p100 = scmp.eq.s32.totalorder %s24, 1
      %p101 = por %p99, %p100
      %p102 = scmp.ne.s32.totalorder %s93, %s94
      %p103 = scmp.eq.s32.totalorder %s24, 0
      %p104 = por %p102, %p103
      %p105 = scmp.ne.s32.totalorder %s93, %s94
      %p106 = scmp.eq.s32.totalorder %s25, 1
      %p107 = por %p105, %p106
      %p109 = scmp.ne.s32.totalorder %s94, %s108
      %p110 = scmp.eq.s32.totalorder %s25, 0
      %p111 = por %p109, %p110
      %s112 = ssub.s32 %s27, %s34
      %p113 = scmp.eq.s32.totalorder %s112, 0
      %s115 = sadd.s32 %s114, 1
      %s116 = scalar_select %p113, %s114, %s115
      %p119 = pneg %p113
      %p120 = scmp.eq.s32.totalorder %s19, 1
      %p121 = por %p119, %p120
      %p122 = scmp.ne.s32.totalorder %s114, %s117
      %p123 = scmp.eq.s32.totalorder %s19, 0
      %p124 = por %p122, %p123
      %p125 = scmp.ne.s32.totalorder %s114, %s117
      %p126 = scmp.eq.s32.totalorder %s24, 1
      %p127 = por %p125, %p126
      %p128 = scmp.ne.s32.totalorder %s117, %s118
      %p129 = scmp.eq.s32.totalorder %s24, 0
      %p130 = por %p128, %p129
      %p131 = scmp.ne.s32.totalorder %s117, %s118
      %p132 = scmp.eq.s32.totalorder %s25, 1
      %p133 = por %p131, %p132
      %p135 = scmp.ne.s32.totalorder %s118, %s134
      %p136 = scmp.eq.s32.totalorder %s25, 0
      %p137 = por %p135, %p136
      %s139 = sadd.s32 %s138, 1
      %p142 = scmp.eq.s32.totalorder %s19, 1
      %p143 = scmp.ne.s32.totalorder %s138, %s140
      %p144 = scmp.eq.s32.totalorder %s19, 0
      %p145 = por %p143, %p144
      %p146 = scmp.ne.s32.totalorder %s138, %s140
      %p147 = scmp.eq.s32.totalorder %s24, 1
      %p148 = por %p146, %p147
      %p149 = scmp.ne.s32.totalorder %s140, %s141
      %p150 = scmp.eq.s32.totalorder %s24, 0
      %p151 = por %p149, %p150
      %p152 = scmp.ne.s32.totalorder %s140, %s141
      %p153 = scmp.eq.s32.totalorder %s25, 1
      %p154 = por %p152, %p153
      %p156 = scmp.ne.s32.totalorder %s141, %s155
      %p157 = scmp.eq.s32.totalorder %s25, 0
      %p158 = por %p156, %p157
      %s159 = ssub.s32 %s26, %s38
      %p160 = scmp.eq.s32.totalorder %s159, 0
      %s162 = sadd.s32 %s161, 1
      %s163 = scalar_select %p160, %s161, %s162
      %p166 = pneg %p160
      %p167 = scmp.eq.s32.totalorder %s19, 1
      %p168 = por %p166, %p167
      %p169 = scmp.ne.s32.totalorder %s161, %s164
      %p170 = scmp.eq.s32.totalorder %s19, 0
      %p171 = por %p169, %p170
      %p172 = scmp.ne.s32.totalorder %s161, %s164
      %p173 = scmp.eq.s32.totalorder %s24, 1
      %p174 = por %p172, %p173
      %p175 = scmp.ne.s32.totalorder %s164, %s165
      %p176 = scmp.eq.s32.totalorder %s24, 0
      %p177 = por %p175, %p176
      %p178 = scmp.ne.s32.totalorder %s164, %s165
      %p179 = scmp.eq.s32.totalorder %s25, 1
      %p180 = por %p178, %p179
      %p182 = scmp.ne.s32.totalorder %s165, %s181
      %p183 = scmp.eq.s32.totalorder %s25, 0
      %p184 = por %p182, %p183
      %p185 = scmp.le.s32.totalorder 1, %s19
      %p186 = scmp.lt.s32.totalorder %s19, 3
      %p187 = pnand %p185, %p186
      %p188 = pneg %p187
      // Predicated region
      $region9: #{tpu_custom_call.1} parent=5 // pred_check
        _
      $region10: #{tpu_custom_call.1} parent=5 // pred_check_branch
        %190 = sbr.rel (%p187) target = $region12
      $region11: #{tpu_custom_call.1} parent=5 // pred_region
        %s191 = ssub.s32 %s19, 1
        // Predicated region
        $region13: #{tpu_custom_call.1} parent=11 // pred_check
          %p192 = pneg %p57
        $region14: #{tpu_custom_call.1} parent=11 // pred_check_branch
          %194 = sbr.rel (%p192) target = $region16
        $region15: #{tpu_custom_call.1} parent=11 // pred_region
          %s195 = smul.u32 4, %s28
          %s197 = ssub.s32 1024, 1024
          %198 = vsyncadd [#allocation4], %s197
          %s199 = smul.addr %s195, 2
          %s200 = smul.addr %s199, 128
          %s201 = scalar_lea.hbm %s0, %s200
          %s202 = sshll.u32 [#allocation3], 4
          %s203 = int_to_ptr.vmem [resolvable:$true] %s202
          %208 = dma.hbm_to_vmem [thread:$0]  %s201, 1024, %s203, [#allocation4], 256, 256, 16
        $region16: #{tpu_custom_call.1} parent=11 // pred_fallthru
          _
        // Predicated region
        $region17: #{tpu_custom_call.1} parent=11 // pred_check
          %p209 = pneg %p104
        $region18: #{tpu_custom_call.1} parent=11 // pred_check_branch
          %211 = sbr.rel (%p209) target = $region20
        $region19: #{tpu_custom_call.1} parent=11 // pred_region
          %s213 = ssub.s32 128, 128
          %214 = vsyncadd [#allocation7], %s213
          %s216 = sshll.u32 [#allocation8], 4
          %s217 = int_to_ptr.vmem [resolvable:$true] %s216
          %219 = dma.hbm_to_vmem [thread:$0]  %s2, 128, %s217, [#allocation7]
        $region20: #{tpu_custom_call.1} parent=11 // pred_fallthru
          _
        // Predicated region
        $region21: #{tpu_custom_call.1} parent=11 // pred_check
          %p220 = pneg %p151
        $region22: #{tpu_custom_call.1} parent=11 // pred_check_branch
          %222 = sbr.rel (%p220) target = $region24
        $region23: #{tpu_custom_call.1} parent=11 // pred_region
          _
        $region24: #{tpu_custom_call.1} parent=11 // pred_fallthru
          _
      $region12: #{tpu_custom_call.1} parent=5 // pred_fallthru
        _
      %p223 = scmp.lt.s32.totalorder %s19, 2
      // Predicated region
      $region25: #{tpu_custom_call.1} parent=5 // pred_check
        %p224 = pneg %p223
      $region26: #{tpu_custom_call.1} parent=5 // pred_check_branch
        %226 = sbr.rel (%p224) target = $region28
      $region27: #{tpu_custom_call.1} parent=5 // pred_region
        // Predicated region
        $region29: #{tpu_custom_call.1} parent=27 // pred_check
          %p227 = pneg %p77
        $region30: #{tpu_custom_call.1} parent=27 // pred_check_branch
          %229 = sbr.rel (%p227) target = $region32
        $region31: #{tpu_custom_call.1} parent=27 // pred_region
          %s230 = sand.u32 %s19, 1
          %s231 = scalar_lea.sflag [#allocation7], %s230
          %s232 = sand.u32 %s67, 1
          %s233 = smul.addr %s232, 1024
          %s234 = scalar_lea.vmem [#allocation6], %s233
          %s235 = smul.u32 4, %s27
          %s237 = ssub.s32 16384, 16384
          %238 = vsyncadd %s231, %s237
          %s239 = smul.addr %s235, 128
          %s240 = scalar_lea.hbm %s1, %s239
          %s241 = sshll.u32 %s234, 4
          %s242 = int_to_ptr.vmem [resolvable:$true] %s241
          %247 = dma.hbm_to_vmem [thread:$0]  %s240, 16384, %s242, %s231, 1024, 512, 32
        $region32: #{tpu_custom_call.1} parent=27 // pred_fallthru
          _
        // Predicated region
        $region33: #{tpu_custom_call.1} parent=27 // pred_check
          %p248 = pneg %p124
        $region34: #{tpu_custom_call.1} parent=27 // pred_check_branch
          %250 = sbr.rel (%p248) target = $region36
        $region35: #{tpu_custom_call.1} parent=27 // pred_region
          %s251 = sand.u32 %s114, 1
          %s252 = scalar_lea.sflag [#allocation10], %s251
          %s253 = sand.u32 %s114, 1
          %s254 = smul.addr %s253, 1024
          %s255 = scalar_lea.vmem [#allocation9], %s254
          %s256 = smul.u32 64, %s27
          %s258 = ssub.s32 16384, 16384
          %259 = vsyncadd %s252, %s258
          %s260 = smul.addr %s256, 2
          %s261 = smul.addr %s260, 128
          %s262 = scalar_lea.hbm %s3, %s261
          %s263 = sshll.u32 %s255, 4
          %s264 = int_to_ptr.vmem [resolvable:$true] %s263
          %269 = dma.hbm_to_vmem [thread:$0]  %s262, 16384, %s264, %s252, 256, 256, 16
        $region36: #{tpu_custom_call.1} parent=27 // pred_fallthru
          _
      $region28: #{tpu_custom_call.1} parent=5 // pred_fallthru
        _
      %p270 = scmp.le.s32.totalorder 1, %s19
      %p271 = scmp.lt.s32.totalorder %s19, 3
      %p272 = pnand %p270, %p271
      %p273 = pneg %p272
      // Predicated region
      $region37: #{tpu_custom_call.1} parent=5 // pred_check
        _
      $region38: #{tpu_custom_call.1} parent=5 // pred_check_branch
        %275 = sbr.rel (%p272) target = $region40
      $region39: #{tpu_custom_call.1} parent=5 // pred_region
        %s276 = ssub.s32 %s19, 1
        // Predicated region
        $region41: #{tpu_custom_call.1} parent=39 // pred_check
          %p277 = pneg %p57
        $region42: #{tpu_custom_call.1} parent=39 // pred_check_branch
          %279 = sbr.rel (%p277) target = $region44
        $region43: #{tpu_custom_call.1} parent=39 // pred_region
          %280 = dma.done [#allocation4], 1024
        $region44: #{tpu_custom_call.1} parent=39 // pred_fallthru
          _
        %s281 = sand.u32 %s24, 1
        %s282 = scalar_lea.sflag [#allocation7], %s281
        %s283 = sand.u32 %s70, 1
        %s284 = smul.addr %s283, 1024
        %s285 = scalar_lea.vmem [#allocation6], %s284
        // Predicated region
        $region45: #{tpu_custom_call.1} parent=39 // pred_check
          %p286 = pneg %p83
        $region46: #{tpu_custom_call.1} parent=39 // pred_check_branch
          %288 = sbr.rel (%p286) target = $region48
        $region47: #{tpu_custom_call.1} parent=39 // pred_region
          %289 = dma.done %s282, 16384
        $region48: #{tpu_custom_call.1} parent=39 // pred_fallthru
          _
        // Predicated region
        $region49: #{tpu_custom_call.1} parent=39 // pred_check
          %p290 = pneg %p104
        $region50: #{tpu_custom_call.1} parent=39 // pred_check_branch
          %292 = sbr.rel (%p290) target = $region52
        $region51: #{tpu_custom_call.1} parent=39 // pred_region
          %293 = dma.done [#allocation7], 128
        $region52: #{tpu_custom_call.1} parent=39 // pred_fallthru
          _
        %s294 = sand.u32 %s117, 1
        %s295 = scalar_lea.sflag [#allocation10], %s294
        %s296 = sand.u32 %s117, 1
        %s297 = smul.addr %s296, 1024
        %s298 = scalar_lea.vmem [#allocation9], %s297
        // Predicated region
        $region53: #{tpu_custom_call.1} parent=39 // pred_check
          %p299 = pneg %p130
        $region54: #{tpu_custom_call.1} parent=39 // pred_check_branch
          %301 = sbr.rel (%p299) target = $region56
        $region55: #{tpu_custom_call.1} parent=39 // pred_region
          %302 = dma.done %s295, 16384
        $region56: #{tpu_custom_call.1} parent=39 // pred_fallthru
          _
        %p303 = pneg %p57
        %p304 = pneg %p54
        %s305 = sand.u32 %s24, 1
        %s306 = scalar_lea.sflag [#allocation7], %s305
        %s307 = sand.u32 %s70, 1
        %s308 = smul.addr %s307, 1024
        %s309 = scalar_lea.vmem [#allocation6], %s308
        %p310 = pneg %p83
        %p311 = pneg %p80
        %p312 = pneg %p104
        %p313 = pneg %p101
        %s314 = sand.u32 %s117, 1
        %s315 = scalar_lea.sflag [#allocation10], %s314
        %s316 = sand.u32 %s117, 1
        %s317 = smul.addr %s316, 1024
        %s318 = scalar_lea.vmem [#allocation9], %s317
        %p319 = pneg %p130
        %p320 = pneg %p127
        %p321 = pneg %p151
        %p322 = pneg %p148
        %p323 = pneg %p177
        %p324 = pneg %p174
        %s325 = smul.u32 4, %s28
        %s326 = smul.u32 4, %s29
        %s327 = smul.u32 64, %s29
        %s328 = smul.u32 4, %s28
        %p329 = scmp.eq.s32.totalorder %s29, 0
        // Predicated region
        $region57: #{tpu_custom_call.1} parent=39 // pred_check
          %p330 = pneg %p329
        $region58: #{tpu_custom_call.1} parent=39 // pred_check_branch
          %332 = sbr.rel (%p330) target = $region60
        $region59: #{tpu_custom_call.1} parent=39 // pred_region
          %v333 = vld [vmem:[%s4] sm:$0x3]
          %v335 = vlaneseq
          %v336 = vshrl.u32 %v335, 7
          %v337 = vsub.s32 0, %v336
          %v338 = vrot.slane %v333, %v337
          %v339 = vlaneseq
          %v340 = vshrl.u32 %v339, 7
          %v341 = vsub.s32 1, %v340
          %v342 = vrot.slane %v333, %v341
          %345 = vst [vmem:[#allocation2] sm:$0xff] %v338
          %346 = vst [vmem:[#allocation2 + $0x8] sm:$0xff] %v342
          %347 = vst [vmem:[#allocation2 + $0x10] sm:$0xff] %v338
          %348 = vst [vmem:[#allocation2 + $0x18] sm:$0xff] %v342
          %349 = vst [vmem:[#allocation2 + $0x20] sm:$0xff] %v338
          %350 = vst [vmem:[#allocation2 + $0x28] sm:$0xff] %v342
          %351 = vst [vmem:[#allocation2 + $0x30] sm:$0xff] %v338
          %352 = vst [vmem:[#allocation2 + $0x38] sm:$0xff] %v342
        $region60: #{tpu_custom_call.1} parent=39 // pred_fallthru
          _
        %v353 = vld [vmem:[#allocation3] sm:$0xff]
        %v354 = vld [vmem:[#allocation3 + $0x8] sm:$0xff]
        %v355 = vld [vmem:[#allocation3 + $0x10] sm:$0xff]
        %v356 = vld [vmem:[#allocation3 + $0x18] sm:$0xff]
        %v357 = vld [vmem:[#allocation3 + $0x20] sm:$0xff]
        %v358 = vld [vmem:[#allocation3 + $0x28] sm:$0xff]
        %v359 = vld [vmem:[#allocation3 + $0x30] sm:$0xff]
        %v360 = vld [vmem:[#allocation3 + $0x38] sm:$0xff]
        %v361 = vld [vmem:[%s285] sm:$0xff]
        %v362 = vld [vmem:[%s285 + $0x8] sm:$0xff]
        %v363 = vld [vmem:[%s285 + $0x10] sm:$0xff]
        %v364 = vld [vmem:[%s285 + $0x18] sm:$0xff]
        %v365 = vld [vmem:[%s285 + $0x20] sm:$0xff]
        %v366 = vld [vmem:[%s285 + $0x28] sm:$0xff]
        %v367 = vld [vmem:[%s285 + $0x30] sm:$0xff]
        %v368 = vld [vmem:[%s285 + $0x38] sm:$0xff]
        %v369 = vld [vmem:[%s285 + $0x40] sm:$0xff]
        %v370 = vld [vmem:[%s285 + $0x48] sm:$0xff]
        %v371 = vld [vmem:[%s285 + $0x50] sm:$0xff]
        %v372 = vld [vmem:[%s285 + $0x58] sm:$0xff]
        %v373 = vld [vmem:[%s285 + $0x60] sm:$0xff]
        %v374 = vld [vmem:[%s285 + $0x68] sm:$0xff]
        %v375 = vld [vmem:[%s285 + $0x70] sm:$0xff]
        %v376 = vld [vmem:[%s285 + $0x78] sm:$0xff]
        %v377 = vld [vmem:[%s285 + $0x80] sm:$0xff]
        %v378 = vld [vmem:[%s285 + $0x88] sm:$0xff]
        %v379 = vld [vmem:[%s285 + $0x90] sm:$0xff]
        %v380 = vld [vmem:[%s285 + $0x98] sm:$0xff]
        %v381 = vld [vmem:[%s285 + $0xa0] sm:$0xff]
        %v382 = vld [vmem:[%s285 + $0xa8] sm:$0xff]
        %v383 = vld [vmem:[%s285 + $0xb0] sm:$0xff]
        %v384 = vld [vmem:[%s285 + $0xb8] sm:$0xff]
        %v385 = vld [vmem:[%s285 + $0xc0] sm:$0xff]
        %v386 = vld [vmem:[%s285 + $0xc8] sm:$0xff]
        %v387 = vld [vmem:[%s285 + $0xd0] sm:$0xff]
        %v388 = vld [vmem:[%s285 + $0xd8] sm:$0xff]
        %v389 = vld [vmem:[%s285 + $0xe0] sm:$0xff]
        %v390 = vld [vmem:[%s285 + $0xe8] sm:$0xff]
        %v391 = vld [vmem:[%s285 + $0xf0] sm:$0xff]
        %v392 = vld [vmem:[%s285 + $0xf8] sm:$0xff]
        %v393 = vld [vmem:[%s285 + $0x100] sm:$0xff]
        %v394 = vld [vmem:[%s285 + $0x108] sm:$0xff]
        %v395 = vld [vmem:[%s285 + $0x110] sm:$0xff]
        %v396 = vld [vmem:[%s285 + $0x118] sm:$0xff]
        %v397 = vld [vmem:[%s285 + $0x120] sm:$0xff]
        %v398 = vld [vmem:[%s285 + $0x128] sm:$0xff]
        %v399 = vld [vmem:[%s285 + $0x130] sm:$0xff]
        %v400 = vld [vmem:[%s285 + $0x138] sm:$0xff]
        %v401 = vld [vmem:[%s285 + $0x140] sm:$0xff]
        %v402 = vld [vmem:[%s285 + $0x148] sm:$0xff]
        %v403 = vld [vmem:[%s285 + $0x150] sm:$0xff]
        %v404 = vld [vmem:[%s285 + $0x158] sm:$0xff]
        %v405 = vld [vmem:[%s285 + $0x160] sm:$0xff]
        %v406 = vld [vmem:[%s285 + $0x168] sm:$0xff]
        %v407 = vld [vmem:[%s285 + $0x170] sm:$0xff]
        %v408 = vld [vmem:[%s285 + $0x178] sm:$0xff]
        %v409 = vld [vmem:[%s285 + $0x180] sm:$0xff]
        %v410 = vld [vmem:[%s285 + $0x188] sm:$0xff]
        %v411 = vld [vmem:[%s285 + $0x190] sm:$0xff]
        %v412 = vld [vmem:[%s285 + $0x198] sm:$0xff]
        %v413 = vld [vmem:[%s285 + $0x1a0] sm:$0xff]
        %v414 = vld [vmem:[%s285 + $0x1a8] sm:$0xff]
        %v415 = vld [vmem:[%s285 + $0x1b0] sm:$0xff]
        %v416 = vld [vmem:[%s285 + $0x1b8] sm:$0xff]
        %v417 = vld [vmem:[%s285 + $0x1c0] sm:$0xff]
        %v418 = vld [vmem:[%s285 + $0x1c8] sm:$0xff]
        %v419 = vld [vmem:[%s285 + $0x1d0] sm:$0xff]
        %v420 = vld [vmem:[%s285 + $0x1d8] sm:$0xff]
        %v421 = vld [vmem:[%s285 + $0x1e0] sm:$0xff]
        %v422 = vld [vmem:[%s285 + $0x1e8] sm:$0xff]
        %v423 = vld [vmem:[%s285 + $0x1f0] sm:$0xff]
        %v424 = vld [vmem:[%s285 + $0x1f8] sm:$0xff]
        %v425 = vld [vmem:[%s285 + $0x200] sm:$0xff]
        %v426 = vld [vmem:[%s285 + $0x208] sm:$0xff]
        %v427 = vld [vmem:[%s285 + $0x210] sm:$0xff]
        %v428 = vld [vmem:[%s285 + $0x218] sm:$0xff]
        %v429 = vld [vmem:[%s285 + $0x220] sm:$0xff]
        %v430 = vld [vmem:[%s285 + $0x228] sm:$0xff]
        %v431 = vld [vmem:[%s285 + $0x230] sm:$0xff]
        %v432 = vld [vmem:[%s285 + $0x238] sm:$0xff]
        %v433 = vld [vmem:[%s285 + $0x240] sm:$0xff]
        %v434 = vld [vmem:[%s285 + $0x248] sm:$0xff]
        %v435 = vld [vmem:[%s285 + $0x250] sm:$0xff]
        %v436 = vld [vmem:[%s285 + $0x258] sm:$0xff]
        %v437 = vld [vmem:[%s285 + $0x260] sm:$0xff]
        %v438 = vld [vmem:[%s285 + $0x268] sm:$0xff]
        %v439 = vld [vmem:[%s285 + $0x270] sm:$0xff]
        %v440 = vld [vmem:[%s285 + $0x278] sm:$0xff]
        %v441 = vld [vmem:[%s285 + $0x280] sm:$0xff]
        %v442 = vld [vmem:[%s285 + $0x288] sm:$0xff]
        %v443 = vld [vmem:[%s285 + $0x290] sm:$0xff]
        %v444 = vld [vmem:[%s285 + $0x298] sm:$0xff]
        %v445 = vld [vmem:[%s285 + $0x2a0] sm:$0xff]
        %v446 = vld [vmem:[%s285 + $0x2a8] sm:$0xff]
        %v447 = vld [vmem:[%s285 + $0x2b0] sm:$0xff]
        %v448 = vld [vmem:[%s285 + $0x2b8] sm:$0xff]
        %v449 = vld [vmem:[%s285 + $0x2c0] sm:$0xff]
        %v450 = vld [vmem:[%s285 + $0x2c8] sm:$0xff]
        %v451 = vld [vmem:[%s285 + $0x2d0] sm:$0xff]
        %v452 = vld [vmem:[%s285 + $0x2d8] sm:$0xff]
        %v453 = vld [vmem:[%s285 + $0x2e0] sm:$0xff]
        %v454 = vld [vmem:[%s285 + $0x2e8] sm:$0xff]
        %v455 = vld [vmem:[%s285 + $0x2f0] sm:$0xff]
        %v456 = vld [vmem:[%s285 + $0x2f8] sm:$0xff]
        %v457 = vld [vmem:[%s285 + $0x300] sm:$0xff]
        %v458 = vld [vmem:[%s285 + $0x308] sm:$0xff]
        %v459 = vld [vmem:[%s285 + $0x310] sm:$0xff]
        %v460 = vld [vmem:[%s285 + $0x318] sm:$0xff]
        %v461 = vld [vmem:[%s285 + $0x320] sm:$0xff]
        %v462 = vld [vmem:[%s285 + $0x328] sm:$0xff]
        %v463 = vld [vmem:[%s285 + $0x330] sm:$0xff]
        %v464 = vld [vmem:[%s285 + $0x338] sm:$0xff]
        %v465 = vld [vmem:[%s285 + $0x340] sm:$0xff]
        %v466 = vld [vmem:[%s285 + $0x348] sm:$0xff]
        %v467 = vld [vmem:[%s285 + $0x350] sm:$0xff]
        %v468 = vld [vmem:[%s285 + $0x358] sm:$0xff]
        %v469 = vld [vmem:[%s285 + $0x360] sm:$0xff]
        %v470 = vld [vmem:[%s285 + $0x368] sm:$0xff]
        %v471 = vld [vmem:[%s285 + $0x370] sm:$0xff]
        %v472 = vld [vmem:[%s285 + $0x378] sm:$0xff]
        %v473 = vld [vmem:[%s285 + $0x380] sm:$0xff]
        %v474 = vld [vmem:[%s285 + $0x388] sm:$0xff]
        %v475 = vld [vmem:[%s285 + $0x390] sm:$0xff]
        %v476 = vld [vmem:[%s285 + $0x398] sm:$0xff]
        %v477 = vld [vmem:[%s285 + $0x3a0] sm:$0xff]
        %v478 = vld [vmem:[%s285 + $0x3a8] sm:$0xff]
        %v479 = vld [vmem:[%s285 + $0x3b0] sm:$0xff]
        %v480 = vld [vmem:[%s285 + $0x3b8] sm:$0xff]
        %v481 = vld [vmem:[%s285 + $0x3c0] sm:$0xff]
        %v482 = vld [vmem:[%s285 + $0x3c8] sm:$0xff]
        %v483 = vld [vmem:[%s285 + $0x3d0] sm:$0xff]
        %v484 = vld [vmem:[%s285 + $0x3d8] sm:$0xff]
        %v485 = vld [vmem:[%s285 + $0x3e0] sm:$0xff]
        %v486 = vld [vmem:[%s285 + $0x3e8] sm:$0xff]
        %v487 = vld [vmem:[%s285 + $0x3f0] sm:$0xff]
        %v488 = vld [vmem:[%s285 + $0x3f8] sm:$0xff]
        %s489 = sshra.s32 %s29, 1
        %s490 = sand.u32 %s29, 1
        %s491 = sshra.s32 %s29, 1
        %s492 = sand.u32 %s29, 1
        %s493 = smul.u32 %s489, 4
        %s494 = smul.u32 %s493, 2
        %s495 = sadd.s32 %s494, %s492
        %s496 = scalar_lea.vmem [#allocation8], %s495
        %v497 = vld [vmem:[%s496] ss:$2 sm:$0xf]
        %v499 = vlaneseq
        %v500 = vshrl.u32 %v499, 7
        %v501 = vsub.s32 0, %v500
        %v502 = vrot.slane %v497, %v501
        %v503 = vlaneseq
        %v504 = vshrl.u32 %v503, 7
        %v505 = vsub.s32 1, %v504
        %v506 = vrot.slane %v497, %v505
        %v507 = vlaneseq
        %v508 = vshrl.u32 %v507, 7
        %v509 = vsub.s32 2, %v508
        %v510 = vrot.slane %v497, %v509
        %v511 = vlaneseq
        %v512 = vshrl.u32 %v511, 7
        %v513 = vsub.s32 3, %v512
        %v514 = vrot.slane %v497, %v513
        %519 = vmatprep.subr.mxu0 %v422
        %520 = vmatpush1.msra.mxu0 %v421
        %521 = vmatprep.subr.mxu0 %v418
        %522 = vmatpush1.msra.mxu0 %v417
        %523 = vmatprep.subr.mxu0 %v414
        %524 = vmatpush1.msra.mxu0 %v413
        %525 = vmatprep.subr.mxu0 %v410
        %526 = vmatpush1.msra.mxu0 %v409
        %527 = vmatprep.subr.mxu0 %v406
        %528 = vmatpush1.msra.mxu0 %v405
        %529 = vmatprep.subr.mxu0 %v402
        %530 = vmatpush1.msra.mxu0 %v401
        %531 = vmatprep.subr.mxu0 %v398
        %532 = vmatpush1.msra.mxu0 %v397
        %533 = vmatprep.subr.mxu0 %v394
        %534 = vmatpush1.msra.mxu0 %v393
        %535 = vmatprep.subr.mxu0 %v390
        %536 = vmatpush1.msra.mxu0 %v389
        %537 = vmatprep.subr.mxu0 %v386
        %538 = vmatpush1.msra.mxu0 %v385
        %539 = vmatprep.subr.mxu0 %v382
        %540 = vmatpush1.msra.mxu0 %v381
        %541 = vmatprep.subr.mxu0 %v378
        %542 = vmatpush1.msra.mxu0 %v377
        %543 = vmatprep.subr.mxu0 %v374
        %544 = vmatpush1.msra.mxu0 %v373
        %545 = vmatprep.subr.mxu0 %v370
        %546 = vmatpush1.msra.mxu0 %v369
        %547 = vmatprep.subr.mxu0 %v366
        %548 = vmatpush1.msra.mxu0 %v365
        %549 = vmatprep.subr.mxu0 %v362
        %550 = vmatpush1.msra.mxu0 %v361
        %551 = vmatprep.subr.mxu0 %v486
        %552 = vmatpush2.msra.mxu0 %v485
        %553 = vmatprep.subr.mxu0 %v482
        %554 = vmatpush2.msra.mxu0 %v481
        %555 = vmatprep.subr.mxu0 %v478
        %556 = vmatpush2.msra.mxu0 %v477
        %557 = vmatprep.subr.mxu0 %v474
        %558 = vmatpush2.msra.mxu0 %v473
        %559 = vmatprep.subr.mxu0 %v470
        %560 = vmatpush2.msra.mxu0 %v469
        %561 = vmatprep.subr.mxu0 %v466
        %562 = vmatpush2.msra.mxu0 %v465
        %563 = vmatprep.subr.mxu0 %v462
        %564 = vmatpush2.msra.mxu0 %v461
        %565 = vmatprep.subr.mxu0 %v458
        %566 = vmatpush2.msra.mxu0 %v457
        %567 = vmatprep.subr.mxu0 %v454
        %568 = vmatpush2.msra.mxu0 %v453
        %569 = vmatprep.subr.mxu0 %v450
        %570 = vmatpush2.msra.mxu0 %v449
        %571 = vmatprep.subr.mxu0 %v446
        %572 = vmatpush2.msra.mxu0 %v445
        %573 = vmatprep.subr.mxu0 %v442
        %574 = vmatpush2.msra.mxu0 %v441
        %575 = vmatprep.subr.mxu0 %v438
        %576 = vmatpush2.msra.mxu0 %v437
        %577 = vmatprep.subr.mxu0 %v434
        %578 = vmatpush2.msra.mxu0 %v433
        %579 = vmatprep.subr.mxu0 %v430
        %580 = vmatpush2.msra.mxu0 %v429
        %581 = vmatprep.subr.mxu0 %v426
        %582 = vmatpush2.msra.mxu0 %v425
        %583 = vmatprep.mubr.f32.mxu0 %v354
        %584 = vmatmul.mubr.f32.gmra.mxu0 %v353
        %v585 = vpop.f32.mrf.mxu0
        %v586 = vadd.f32 %v502, %v585
        %v587 = vpop.f32.mrf.mxu0
        %v588 = vadd.f32 %v506, %v587
        %589 = vmatprep.mubr.f32.mxu0 %v356
        %590 = vmatmul.mubr.f32.gmra.mxu0 %v355
        %v591 = vpop.f32.mrf.mxu0
        %v592 = vadd.f32 %v502, %v591
        %v593 = vpop.f32.mrf.mxu0
        %v594 = vadd.f32 %v506, %v593
        %595 = vmatprep.mubr.f32.mxu0 %v358
        %596 = vmatmul.mubr.f32.gmra.mxu0 %v357
        %v597 = vpop.f32.mrf.mxu0
        %v598 = vadd.f32 %v502, %v597
        %v599 = vpop.f32.mrf.mxu0
        %v600 = vadd.f32 %v506, %v599
        %601 = vmatprep.mubr.f32.mxu0 %v360
        %602 = vmatmul.mubr.f32.gmra.mxu0 %v359
        %v603 = vpop.f32.mrf.mxu0
        %v604 = vadd.f32 %v502, %v603
        %v605 = vpop.f32.mrf.mxu0
        %v606 = vadd.f32 %v506, %v605
        %607 = vdwg.mxu0
        %608 = vmatprep.subr.mxu0 %v424
        %609 = vmatpush1.msra.mxu0 %v423
        %610 = vmatprep.subr.mxu0 %v420
        %611 = vmatpush1.msra.mxu0 %v419
        %612 = vmatprep.subr.mxu0 %v416
        %613 = vmatpush1.msra.mxu0 %v415
        %614 = vmatprep.subr.mxu0 %v412
        %615 = vmatpush1.msra.mxu0 %v411
        %616 = vmatprep.subr.mxu0 %v408
        %617 = vmatpush1.msra.mxu0 %v407
        %618 = vmatprep.subr.mxu0 %v404
        %619 = vmatpush1.msra.mxu0 %v403
        %620 = vmatprep.subr.mxu0 %v400
        %621 = vmatpush1.msra.mxu0 %v399
        %622 = vmatprep.subr.mxu0 %v396
        %623 = vmatpush1.msra.mxu0 %v395
        %624 = vmatprep.subr.mxu0 %v392
        %625 = vmatpush1.msra.mxu0 %v391
        %626 = vmatprep.subr.mxu0 %v388
        %627 = vmatpush1.msra.mxu0 %v387
        %628 = vmatprep.subr.mxu0 %v384
        %629 = vmatpush1.msra.mxu0 %v383
        %630 = vmatprep.subr.mxu0 %v380
        %631 = vmatpush1.msra.mxu0 %v379
        %632 = vmatprep.subr.mxu0 %v376
        %633 = vmatpush1.msra.mxu0 %v375
        %634 = vmatprep.subr.mxu0 %v372
        %635 = vmatpush1.msra.mxu0 %v371
        %636 = vmatprep.subr.mxu0 %v368
        %637 = vmatpush1.msra.mxu0 %v367
        %638 = vmatprep.subr.mxu0 %v364
        %639 = vmatpush1.msra.mxu0 %v363
        %640 = vmatprep.subr.mxu0 %v488
        %641 = vmatpush2.msra.mxu0 %v487
        %642 = vmatprep.subr.mxu0 %v484
        %643 = vmatpush2.msra.mxu0 %v483
        %644 = vmatprep.subr.mxu0 %v480
        %645 = vmatpush2.msra.mxu0 %v479
        %646 = vmatprep.subr.mxu0 %v476
        %647 = vmatpush2.msra.mxu0 %v475
        %648 = vmatprep.subr.mxu0 %v472
        %649 = vmatpush2.msra.mxu0 %v471
        %650 = vmatprep.subr.mxu0 %v468
        %651 = vmatpush2.msra.mxu0 %v467
        %652 = vmatprep.subr.mxu0 %v464
        %653 = vmatpush2.msra.mxu0 %v463
        %654 = vmatprep.subr.mxu0 %v460
        %655 = vmatpush2.msra.mxu0 %v459
        %656 = vmatprep.subr.mxu0 %v456
        %657 = vmatpush2.msra.mxu0 %v455
        %658 = vmatprep.subr.mxu0 %v452
        %659 = vmatpush2.msra.mxu0 %v451
        %660 = vmatprep.subr.mxu0 %v448
        %661 = vmatpush2.msra.mxu0 %v447
        %662 = vmatprep.subr.mxu0 %v444
        %663 = vmatpush2.msra.mxu0 %v443
        %664 = vmatprep.subr.mxu0 %v440
        %665 = vmatpush2.msra.mxu0 %v439
        %666 = vmatprep.subr.mxu0 %v436
        %667 = vmatpush2.msra.mxu0 %v435
        %668 = vmatprep.subr.mxu0 %v432
        %669 = vmatpush2.msra.mxu0 %v431
        %670 = vmatprep.subr.mxu0 %v428
        %671 = vmatpush2.msra.mxu0 %v427
        %672 = vmatprep.mubr.f32.mxu0 %v354
        %673 = vmatmul.mubr.f32.gmra.mxu0 %v353
        %v674 = vpop.f32.mrf.mxu0
        %v675 = vadd.f32 %v510, %v674
        %v676 = vpop.f32.mrf.mxu0
        %v677 = vadd.f32 %v514, %v676
        %678 = vmatprep.mubr.f32.mxu0 %v356
        %679 = vmatmul.mubr.f32.gmra.mxu0 %v355
        %v680 = vpop.f32.mrf.mxu0
        %v681 = vadd.f32 %v510, %v680
        %v682 = vpop.f32.mrf.mxu0
        %v683 = vadd.f32 %v514, %v682
        %684 = vmatprep.mubr.f32.mxu0 %v358
        %685 = vmatmul.mubr.f32.gmra.mxu0 %v357
        %v686 = vpop.f32.mrf.mxu0
        %v687 = vadd.f32 %v510, %v686
        %v688 = vpop.f32.mrf.mxu0
        %v689 = vadd.f32 %v514, %v688
        %690 = vmatprep.mubr.f32.mxu0 %v360
        %691 = vmatmul.mubr.f32.gmra.mxu0 %v359
        %v692 = vpop.f32.mrf.mxu0
        %v693 = vadd.f32 %v510, %v692
        %v694 = vpop.f32.mrf.mxu0
        %v695 = vadd.f32 %v514, %v694
        %696 = vdwg.mxu0
        %v697 = vmul.f32 %v586, 0.5
        %v698 = vmul.f32 %v588, 0.5
        %v699 = vmul.f32 %v675, 0.5
        %v700 = vmul.f32 %v677, 0.5
        %v701 = vmul.f32 %v592, 0.5
        %v702 = vmul.f32 %v594, 0.5
        %v703 = vmul.f32 %v681, 0.5
        %v704 = vmul.f32 %v683, 0.5
        %v705 = vmul.f32 %v598, 0.5
        %v706 = vmul.f32 %v600, 0.5
        %v707 = vmul.f32 %v687, 0.5
        %v708 = vmul.f32 %v689, 0.5
        %v709 = vmul.f32 %v604, 0.5
        %v710 = vmul.f32 %v606, 0.5
        %v711 = vmul.f32 %v693, 0.5
        %v712 = vmul.f32 %v695, 0.5
        %v713 = vmul.f32 %v586, 0.70710677
        %v714 = vmul.f32 %v588, 0.70710677
        %v715 = vmul.f32 %v675, 0.70710677
        %v716 = vmul.f32 %v677, 0.70710677
        %v717 = vmul.f32 %v592, 0.70710677
        %v718 = vmul.f32 %v594, 0.70710677
        %v719 = vmul.f32 %v681, 0.70710677
        %v720 = vmul.f32 %v683, 0.70710677
        %v721 = vmul.f32 %v598, 0.70710677
        %v722 = vmul.f32 %v600, 0.70710677
        %v723 = vmul.f32 %v687, 0.70710677
        %v724 = vmul.f32 %v689, 0.70710677
        %v725 = vmul.f32 %v604, 0.70710677
        %v726 = vmul.f32 %v606, 0.70710677
        %v727 = vmul.f32 %v693, 0.70710677
        %v728 = vmul.f32 %v695, 0.70710677
        %v729 = verf.f32.pop %v713
        %v730 = verf.f32.pop %v714
        %v731 = verf.f32.pop %v715
        %v732 = verf.f32.pop %v716
        %v733 = verf.f32.pop %v717
        %v734 = verf.f32.pop %v718
        %v735 = verf.f32.pop %v719
        %v736 = verf.f32.pop %v720
        %v737 = verf.f32.pop %v721
        %v738 = verf.f32.pop %v722
        %v739 = verf.f32.pop %v723
        %v740 = verf.f32.pop %v724
        %v741 = verf.f32.pop %v725
        %v742 = verf.f32.pop %v726
        %v743 = verf.f32.pop %v727
        %v744 = verf.f32.pop %v728
        %v745 = vadd.f32 %v729, 1.0
        %v746 = vadd.f32 %v730, 1.0
        %v747 = vadd.f32 %v731, 1.0
        %v748 = vadd.f32 %v732, 1.0
        %v749 = vadd.f32 %v733, 1.0
        %v750 = vadd.f32 %v734, 1.0
        %v751 = vadd.f32 %v735, 1.0
        %v752 = vadd.f32 %v736, 1.0
        %v753 = vadd.f32 %v737, 1.0
        %v754 = vadd.f32 %v738, 1.0
        %v755 = vadd.f32 %v739, 1.0
        %v756 = vadd.f32 %v740, 1.0
        %v757 = vadd.f32 %v741, 1.0
        %v758 = vadd.f32 %v742, 1.0
        %v759 = vadd.f32 %v743, 1.0
        %v760 = vadd.f32 %v744, 1.0
        %v761 = vmul.f32 %v697, %v745
        %v762 = vmul.f32 %v698, %v746
        %v763 = vmul.f32 %v699, %v747
        %v764 = vmul.f32 %v700, %v748
        %v765 = vmul.f32 %v701, %v749
        %v766 = vmul.f32 %v702, %v750
        %v767 = vmul.f32 %v703, %v751
        %v768 = vmul.f32 %v704, %v752
        %v769 = vmul.f32 %v705, %v753
        %v770 = vmul.f32 %v706, %v754
        %v771 = vmul.f32 %v707, %v755
        %v772 = vmul.f32 %v708, %v756
        %v773 = vmul.f32 %v709, %v757
        %v774 = vmul.f32 %v710, %v758
        %v775 = vmul.f32 %v711, %v759
        %v776 = vmul.f32 %v712, %v760
        %v777 = vld [vmem:[#allocation2] sm:$0xff]
        %v778 = vld [vmem:[#allocation2 + $0x8] sm:$0xff]
        %v779 = vld [vmem:[#allocation2 + $0x10] sm:$0xff]
        %v780 = vld [vmem:[#allocation2 + $0x18] sm:$0xff]
        %v781 = vld [vmem:[#allocation2 + $0x20] sm:$0xff]
        %v782 = vld [vmem:[#allocation2 + $0x28] sm:$0xff]
        %v783 = vld [vmem:[#allocation2 + $0x30] sm:$0xff]
        %v784 = vld [vmem:[#allocation2 + $0x38] sm:$0xff]
        %v785 = vld [vmem:[%s298] sm:$0xff]
        %v786 = vld [vmem:[%s298 + $0x8] sm:$0xff]
        %v787 = vld [vmem:[%s298 + $0x10] sm:$0xff]
        %v788 = vld [vmem:[%s298 + $0x18] sm:$0xff]
        %v789 = vld [vmem:[%s298 + $0x20] sm:$0xff]
        %v790 = vld [vmem:[%s298 + $0x28] sm:$0xff]
        %v791 = vld [vmem:[%s298 + $0x30] sm:$0xff]
        %v792 = vld [vmem:[%s298 + $0x38] sm:$0xff]
        %v793 = vld [vmem:[%s298 + $0x40] sm:$0xff]
        %v794 = vld [vmem:[%s298 + $0x48] sm:$0xff]
        %v795 = vld [vmem:[%s298 + $0x50] sm:$0xff]
        %v796 = vld [vmem:[%s298 + $0x58] sm:$0xff]
        %v797 = vld [vmem:[%s298 + $0x60] sm:$0xff]
        %v798 = vld [vmem:[%s298 + $0x68] sm:$0xff]
        %v799 = vld [vmem:[%s298 + $0x70] sm:$0xff]
        %v800 = vld [vmem:[%s298 + $0x78] sm:$0xff]
        %v801 = vld [vmem:[%s298 + $0x80] sm:$0xff]
        %v802 = vld [vmem:[%s298 + $0x88] sm:$0xff]
        %v803 = vld [vmem:[%s298 + $0x90] sm:$0xff]
        %v804 = vld [vmem:[%s298 + $0x98] sm:$0xff]
        %v805 = vld [vmem:[%s298 + $0xa0] sm:$0xff]
        %v806 = vld [vmem:[%s298 + $0xa8] sm:$0xff]
        %v807 = vld [vmem:[%s298 + $0xb0] sm:$0xff]
        %v808 = vld [vmem:[%s298 + $0xb8] sm:$0xff]
        %v809 = vld [vmem:[%s298 + $0xc0] sm:$0xff]
        %v810 = vld [vmem:[%s298 + $0xc8] sm:$0xff]
        %v811 = vld [vmem:[%s298 + $0xd0] sm:$0xff]
        %v812 = vld [vmem:[%s298 + $0xd8] sm:$0xff]
        %v813 = vld [vmem:[%s298 + $0xe0] sm:$0xff]
        %v814 = vld [vmem:[%s298 + $0xe8] sm:$0xff]
        %v815 = vld [vmem:[%s298 + $0xf0] sm:$0xff]
        %v816 = vld [vmem:[%s298 + $0xf8] sm:$0xff]
        %v817 = vld [vmem:[%s298 + $0x100] sm:$0xff]
        %v818 = vld [vmem:[%s298 + $0x108] sm:$0xff]
        %v819 = vld [vmem:[%s298 + $0x110] sm:$0xff]
        %v820 = vld [vmem:[%s298 + $0x118] sm:$0xff]
        %v821 = vld [vmem:[%s298 + $0x120] sm:$0xff]
        %v822 = vld [vmem:[%s298 + $0x128] sm:$0xff]
        %v823 = vld [vmem:[%s298 + $0x130] sm:$0xff]
        %v824 = vld [vmem:[%s298 + $0x138] sm:$0xff]
        %v825 = vld [vmem:[%s298 + $0x140] sm:$0xff]
        %v826 = vld [vmem:[%s298 + $0x148] sm:$0xff]
        %v827 = vld [vmem:[%s298 + $0x150] sm:$0xff]
        %v828 = vld [vmem:[%s298 + $0x158] sm:$0xff]
        %v829 = vld [vmem:[%s298 + $0x160] sm:$0xff]
        %v830 = vld [vmem:[%s298 + $0x168] sm:$0xff]
        %v831 = vld [vmem:[%s298 + $0x170] sm:$0xff]
        %v832 = vld [vmem:[%s298 + $0x178] sm:$0xff]
        %v833 = vld [vmem:[%s298 + $0x180] sm:$0xff]
        %v834 = vld [vmem:[%s298 + $0x188] sm:$0xff]
        %v835 = vld [vmem:[%s298 + $0x190] sm:$0xff]
        %v836 = vld [vmem:[%s298 + $0x198] sm:$0xff]
        %v837 = vld [vmem:[%s298 + $0x1a0] sm:$0xff]
        %v838 = vld [vmem:[%s298 + $0x1a8] sm:$0xff]
        %v839 = vld [vmem:[%s298 + $0x1b0] sm:$0xff]
        %v840 = vld [vmem:[%s298 + $0x1b8] sm:$0xff]
        %v841 = vld [vmem:[%s298 + $0x1c0] sm:$0xff]
        %v842 = vld [vmem:[%s298 + $0x1c8] sm:$0xff]
        %v843 = vld [vmem:[%s298 + $0x1d0] sm:$0xff]
        %v844 = vld [vmem:[%s298 + $0x1d8] sm:$0xff]
        %v845 = vld [vmem:[%s298 + $0x1e0] sm:$0xff]
        %v846 = vld [vmem:[%s298 + $0x1e8] sm:$0xff]
        %v847 = vld [vmem:[%s298 + $0x1f0] sm:$0xff]
        %v848 = vld [vmem:[%s298 + $0x1f8] sm:$0xff]
        %v849 = vld [vmem:[%s298 + $0x200] sm:$0xff]
        %v850 = vld [vmem:[%s298 + $0x208] sm:$0xff]
        %v851 = vld [vmem:[%s298 + $0x210] sm:$0xff]
        %v852 = vld [vmem:[%s298 + $0x218] sm:$0xff]
        %v853 = vld [vmem:[%s298 + $0x220] sm:$0xff]
        %v854 = vld [vmem:[%s298 + $0x228] sm:$0xff]
        %v855 = vld [vmem:[%s298 + $0x230] sm:$0xff]
        %v856 = vld [vmem:[%s298 + $0x238] sm:$0xff]
        %v857 = vld [vmem:[%s298 + $0x240] sm:$0xff]
        %v858 = vld [vmem:[%s298 + $0x248] sm:$0xff]
        %v859 = vld [vmem:[%s298 + $0x250] sm:$0xff]
        %v860 = vld [vmem:[%s298 + $0x258] sm:$0xff]
        %v861 = vld [vmem:[%s298 + $0x260] sm:$0xff]
        %v862 = vld [vmem:[%s298 + $0x268] sm:$0xff]
        %v863 = vld [vmem:[%s298 + $0x270] sm:$0xff]
        %v864 = vld [vmem:[%s298 + $0x278] sm:$0xff]
        %v865 = vld [vmem:[%s298 + $0x280] sm:$0xff]
        %v866 = vld [vmem:[%s298 + $0x288] sm:$0xff]
        %v867 = vld [vmem:[%s298 + $0x290] sm:$0xff]
        %v868 = vld [vmem:[%s298 + $0x298] sm:$0xff]
        %v869 = vld [vmem:[%s298 + $0x2a0] sm:$0xff]
        %v870 = vld [vmem:[%s298 + $0x2a8] sm:$0xff]
        %v871 = vld [vmem:[%s298 + $0x2b0] sm:$0xff]
        %v872 = vld [vmem:[%s298 + $0x2b8] sm:$0xff]
        %v873 = vld [vmem:[%s298 + $0x2c0] sm:$0xff]
        %v874 = vld [vmem:[%s298 + $0x2c8] sm:$0xff]
        %v875 = vld [vmem:[%s298 + $0x2d0] sm:$0xff]
        %v876 = vld [vmem:[%s298 + $0x2d8] sm:$0xff]
        %v877 = vld [vmem:[%s298 + $0x2e0] sm:$0xff]
        %v878 = vld [vmem:[%s298 + $0x2e8] sm:$0xff]
        %v879 = vld [vmem:[%s298 + $0x2f0] sm:$0xff]
        %v880 = vld [vmem:[%s298 + $0x2f8] sm:$0xff]
        %v881 = vld [vmem:[%s298 + $0x300] sm:$0xff]
        %v882 = vld [vmem:[%s298 + $0x308] sm:$0xff]
        %v883 = vld [vmem:[%s298 + $0x310] sm:$0xff]
        %v884 = vld [vmem:[%s298 + $0x318] sm:$0xff]
        %v885 = vld [vmem:[%s298 + $0x320] sm:$0xff]
        %v886 = vld [vmem:[%s298 + $0x328] sm:$0xff]
        %v887 = vld [vmem:[%s298 + $0x330] sm:$0xff]
        %v888 = vld [vmem:[%s298 + $0x338] sm:$0xff]
        %v889 = vld [vmem:[%s298 + $0x340] sm:$0xff]
        %v890 = vld [vmem:[%s298 + $0x348] sm:$0xff]
        %v891 = vld [vmem:[%s298 + $0x350] sm:$0xff]
        %v892 = vld [vmem:[%s298 + $0x358] sm:$0xff]
        %v893 = vld [vmem:[%s298 + $0x360] sm:$0xff]
        %v894 = vld [vmem:[%s298 + $0x368] sm:$0xff]
        %v895 = vld [vmem:[%s298 + $0x370] sm:$0xff]
        %v896 = vld [vmem:[%s298 + $0x378] sm:$0xff]
        %v897 = vld [vmem:[%s298 + $0x380] sm:$0xff]
        %v898 = vld [vmem:[%s298 + $0x388] sm:$0xff]
        %v899 = vld [vmem:[%s298 + $0x390] sm:$0xff]
        %v900 = vld [vmem:[%s298 + $0x398] sm:$0xff]
        %v901 = vld [vmem:[%s298 + $0x3a0] sm:$0xff]
        %v902 = vld [vmem:[%s298 + $0x3a8] sm:$0xff]
        %v903 = vld [vmem:[%s298 + $0x3b0] sm:$0xff]
        %v904 = vld [vmem:[%s298 + $0x3b8] sm:$0xff]
        %v905 = vld [vmem:[%s298 + $0x3c0] sm:$0xff]
        %v906 = vld [vmem:[%s298 + $0x3c8] sm:$0xff]
        %v907 = vld [vmem:[%s298 + $0x3d0] sm:$0xff]
        %v908 = vld [vmem:[%s298 + $0x3d8] sm:$0xff]
        %v909 = vld [vmem:[%s298 + $0x3e0] sm:$0xff]
        %v910 = vld [vmem:[%s298 + $0x3e8] sm:$0xff]
        %v911 = vld [vmem:[%s298 + $0x3f0] sm:$0xff]
        %v912 = vld [vmem:[%s298 + $0x3f8] sm:$0xff]
        %913 = vmatprep.subr.mxu0 %v816
        %914 = vmatpush1.msra.mxu0 %v815
        %915 = vmatprep.subr.mxu0 %v814
        %916 = vmatpush1.msra.mxu0 %v813
        %917 = vmatprep.subr.mxu0 %v812
        %918 = vmatpush1.msra.mxu0 %v811
        %919 = vmatprep.subr.mxu0 %v810
        %920 = vmatpush1.msra.mxu0 %v809
        %921 = vmatprep.subr.mxu0 %v808
        %922 = vmatpush1.msra.mxu0 %v807
        %923 = vmatprep.subr.mxu0 %v806
        %924 = vmatpush1.msra.mxu0 %v805
        %925 = vmatprep.subr.mxu0 %v804
        %926 = vmatpush1.msra.mxu0 %v803
        %927 = vmatprep.subr.mxu0 %v802
        %928 = vmatpush1.msra.mxu0 %v801
        %929 = vmatprep.subr.mxu0 %v800
        %930 = vmatpush1.msra.mxu0 %v799
        %931 = vmatprep.subr.mxu0 %v798
        %932 = vmatpush1.msra.mxu0 %v797
        %933 = vmatprep.subr.mxu0 %v796
        %934 = vmatpush1.msra.mxu0 %v795
        %935 = vmatprep.subr.mxu0 %v794
        %936 = vmatpush1.msra.mxu0 %v793
        %937 = vmatprep.subr.mxu0 %v792
        %938 = vmatpush1.msra.mxu0 %v791
        %939 = vmatprep.subr.mxu0 %v790
        %940 = vmatpush1.msra.mxu0 %v789
        %941 = vmatprep.subr.mxu0 %v788
        %942 = vmatpush1.msra.mxu0 %v787
        %943 = vmatprep.subr.mxu0 %v786
        %944 = vmatpush1.msra.mxu0 %v785
        %945 = vmatprep.subr.mxu0 %v848
        %946 = vmatpush2.msra.mxu0 %v847
        %947 = vmatprep.subr.mxu0 %v846
        %948 = vmatpush2.msra.mxu0 %v845
        %949 = vmatprep.subr.mxu0 %v844
        %950 = vmatpush2.msra.mxu0 %v843
        %951 = vmatprep.subr.mxu0 %v842
        %952 = vmatpush2.msra.mxu0 %v841
        %953 = vmatprep.subr.mxu0 %v840
        %954 = vmatpush2.msra.mxu0 %v839
        %955 = vmatprep.subr.mxu0 %v838
        %956 = vmatpush2.msra.mxu0 %v837
        %957 = vmatprep.subr.mxu0 %v836
        %958 = vmatpush2.msra.mxu0 %v835
        %959 = vmatprep.subr.mxu0 %v834
        %960 = vmatpush2.msra.mxu0 %v833
        %961 = vmatprep.subr.mxu0 %v832
        %962 = vmatpush2.msra.mxu0 %v831
        %963 = vmatprep.subr.mxu0 %v830
        %964 = vmatpush2.msra.mxu0 %v829
        %965 = vmatprep.subr.mxu0 %v828
        %966 = vmatpush2.msra.mxu0 %v827
        %967 = vmatprep.subr.mxu0 %v826
        %968 = vmatpush2.msra.mxu0 %v825
        %969 = vmatprep.subr.mxu0 %v824
        %970 = vmatpush2.msra.mxu0 %v823
        %971 = vmatprep.subr.mxu0 %v822
        %972 = vmatpush2.msra.mxu0 %v821
        %973 = vmatprep.subr.mxu0 %v820
        %974 = vmatpush2.msra.mxu0 %v819
        %975 = vmatprep.subr.mxu0 %v818
        %976 = vmatpush2.msra.mxu0 %v817
        %977 = vmatprep.mubr.f32.mxu0 %v762
        %978 = vmatmul.mubr.f32.gmra.mxu0 %v761
        %v979 = vpop.f32.mrf.mxu0
        %v980 = vadd.f32 0.0, %v979
        %v981 = vpop.f32.mrf.mxu0
        %v982 = vadd.f32 0.0, %v981
        %983 = vmatprep.mubr.f32.mxu0 %v766
        %984 = vmatmul.mubr.f32.gmra.mxu0 %v765
        %v985 = vpop.f32.mrf.mxu0
        %v986 = vadd.f32 0.0, %v985
        %v987 = vpop.f32.mrf.mxu0
        %v988 = vadd.f32 0.0, %v987
        %989 = vmatprep.mubr.f32.mxu0 %v770
        %990 = vmatmul.mubr.f32.gmra.mxu0 %v769
        %v991 = vpop.f32.mrf.mxu0
        %v992 = vadd.f32 0.0, %v991
        %v993 = vpop.f32.mrf.mxu0
        %v994 = vadd.f32 0.0, %v993
        %995 = vmatprep.mubr.f32.mxu0 %v774
        %996 = vmatmul.mubr.f32.gmra.mxu0 %v773
        %v997 = vpop.f32.mrf.mxu0
        %v998 = vadd.f32 0.0, %v997
        %v999 = vpop.f32.mrf.mxu0
        %v1000 = vadd.f32 0.0, %v999
        %1001 = vdwg.mxu0
        %1002 = vmatprep.subr.mxu0 %v880
        %1003 = vmatpush1.msra.mxu0 %v879
        %1004 = vmatprep.subr.mxu0 %v878
        %1005 = vmatpush1.msra.mxu0 %v877
        %1006 = vmatprep.subr.mxu0 %v876
        %1007 = vmatpush1.msra.mxu0 %v875
        %1008 = vmatprep.subr.mxu0 %v874
        %1009 = vmatpush1.msra.mxu0 %v873
        %1010 = vmatprep.subr.mxu0 %v872
        %1011 = vmatpush1.msra.mxu0 %v871
        %1012 = vmatprep.subr.mxu0 %v870
        %1013 = vmatpush1.msra.mxu0 %v869
        %1014 = vmatprep.subr.mxu0 %v868
        %1015 = vmatpush1.msra.mxu0 %v867
        %1016 = vmatprep.subr.mxu0 %v866
        %1017 = vmatpush1.msra.mxu0 %v865
        %1018 = vmatprep.subr.mxu0 %v864
        %1019 = vmatpush1.msra.mxu0 %v863
        %1020 = vmatprep.subr.mxu0 %v862
        %1021 = vmatpush1.msra.mxu0 %v861
        %1022 = vmatprep.subr.mxu0 %v860
        %1023 = vmatpush1.msra.mxu0 %v859
        %1024 = vmatprep.subr.mxu0 %v858
        %1025 = vmatpush1.msra.mxu0 %v857
        %1026 = vmatprep.subr.mxu0 %v856
        %1027 = vmatpush1.msra.mxu0 %v855
        %1028 = vmatprep.subr.mxu0 %v854
        %1029 = vmatpush1.msra.mxu0 %v853
        %1030 = vmatprep.subr.mxu0 %v852
        %1031 = vmatpush1.msra.mxu0 %v851
        %1032 = vmatprep.subr.mxu0 %v850
        %1033 = vmatpush1.msra.mxu0 %v849
        %1034 = vmatprep.subr.mxu0 %v912
        %1035 = vmatpush2.msra.mxu0 %v911
        %1036 = vmatprep.subr.mxu0 %v910
        %1037 = vmatpush2.msra.mxu0 %v909
        %1038 = vmatprep.subr.mxu0 %v908
        %1039 = vmatpush2.msra.mxu0 %v907
        %1040 = vmatprep.subr.mxu0 %v906
        %1041 = vmatpush2.msra.mxu0 %v905
        %1042 = vmatprep.subr.mxu0 %v904
        %1043 = vmatpush2.msra.mxu0 %v903
        %1044 = vmatprep.subr.mxu0 %v902
        %1045 = vmatpush2.msra.mxu0 %v901
        %1046 = vmatprep.subr.mxu0 %v900
        %1047 = vmatpush2.msra.mxu0 %v899
        %1048 = vmatprep.subr.mxu0 %v898
        %1049 = vmatpush2.msra.mxu0 %v897
        %1050 = vmatprep.subr.mxu0 %v896
        %1051 = vmatpush2.msra.mxu0 %v895
        %1052 = vmatprep.subr.mxu0 %v894
        %1053 = vmatpush2.msra.mxu0 %v893
        %1054 = vmatprep.subr.mxu0 %v892
        %1055 = vmatpush2.msra.mxu0 %v891
        %1056 = vmatprep.subr.mxu0 %v890
        %1057 = vmatpush2.msra.mxu0 %v889
        %1058 = vmatprep.subr.mxu0 %v888
        %1059 = vmatpush2.msra.mxu0 %v887
        %1060 = vmatprep.subr.mxu0 %v886
        %1061 = vmatpush2.msra.mxu0 %v885
        %1062 = vmatprep.subr.mxu0 %v884
        %1063 = vmatpush2.msra.mxu0 %v883
        %1064 = vmatprep.subr.mxu0 %v882
        %1065 = vmatpush2.msra.mxu0 %v881
        %1066 = vmatprep.mubr.f32.mxu0 %v764
        %1067 = vmatmul.mubr.f32.gmra.mxu0 %v763
        %v1068 = vpop.f32.mrf.mxu0
        %v1069 = vadd.f32 %v980, %v1068
        %v1070 = vpop.f32.mrf.mxu0
        %v1071 = vadd.f32 %v982, %v1070
        %1072 = vmatprep.mubr.f32.mxu0 %v768
        %1073 = vmatmul.mubr.f32.gmra.mxu0 %v767
        %v1074 = vpop.f32.mrf.mxu0
        %v1075 = vadd.f32 %v986, %v1074
        %v1076 = vpop.f32.mrf.mxu0
        %v1077 = vadd.f32 %v988, %v1076
        %1078 = vmatprep.mubr.f32.mxu0 %v772
        %1079 = vmatmul.mubr.f32.gmra.mxu0 %v771
        %v1080 = vpop.f32.mrf.mxu0
        %v1081 = vadd.f32 %v992, %v1080
        %v1082 = vpop.f32.mrf.mxu0
        %v1083 = vadd.f32 %v994, %v1082
        %1084 = vmatprep.mubr.f32.mxu0 %v776
        %1085 = vmatmul.mubr.f32.gmra.mxu0 %v775
        %v1086 = vpop.f32.mrf.mxu0
        %v1087 = vadd.f32 %v998, %v1086
        %v1088 = vpop.f32.mrf.mxu0
        %v1089 = vadd.f32 %v1000, %v1088
        %1090 = vdwg.mxu0
        %v1091 = vadd.f32 %v777, %v1069
        %v1092 = vadd.f32 %v778, %v1071
        %v1093 = vadd.f32 %v779, %v1075
        %v1094 = vadd.f32 %v780, %v1077
        %v1095 = vadd.f32 %v781, %v1081
        %v1096 = vadd.f32 %v782, %v1083
        %v1097 = vadd.f32 %v783, %v1087
        %v1098 = vadd.f32 %v784, %v1089
        %1099 = vst [vmem:[#allocation2] sm:$0xff] %v1091
        %1100 = vst [vmem:[#allocation2 + $0x8] sm:$0xff] %v1092
        %1101 = vst [vmem:[#allocation2 + $0x10] sm:$0xff] %v1093
        %1102 = vst [vmem:[#allocation2 + $0x18] sm:$0xff] %v1094
        %1103 = vst [vmem:[#allocation2 + $0x20] sm:$0xff] %v1095
        %1104 = vst [vmem:[#allocation2 + $0x28] sm:$0xff] %v1096
        %1105 = vst [vmem:[#allocation2 + $0x30] sm:$0xff] %v1097
        %1106 = vst [vmem:[#allocation2 + $0x38] sm:$0xff] %v1098
        %p1107 = scmp.eq.s32.totalorder %s29, 1
        // Predicated region
        $region61: #{tpu_custom_call.1} parent=39 // pred_check
          %p1108 = pneg %p1107
        $region62: #{tpu_custom_call.1} parent=39 // pred_check_branch
          %1110 = sbr.rel (%p1108) target = $region64
        $region63: #{tpu_custom_call.1} parent=39 // pred_region
          %v1111 = vld [vmem:[#allocation2] sm:$0xff]
          %v1112 = vld [vmem:[#allocation2 + $0x8] sm:$0xff]
          %v1113 = vld [vmem:[#allocation2 + $0x10] sm:$0xff]
          %v1114 = vld [vmem:[#allocation2 + $0x18] sm:$0xff]
          %v1115 = vld [vmem:[#allocation2 + $0x20] sm:$0xff]
          %v1116 = vld [vmem:[#allocation2 + $0x28] sm:$0xff]
          %v1117 = vld [vmem:[#allocation2 + $0x30] sm:$0xff]
          %v1118 = vld [vmem:[#allocation2 + $0x38] sm:$0xff]
          %1119 = vst [vmem:[#allocation11] sm:$0xff] %v1111
          %1120 = vst [vmem:[#allocation11 + $0x8] sm:$0xff] %v1112
          %1121 = vst [vmem:[#allocation11 + $0x10] sm:$0xff] %v1113
          %1122 = vst [vmem:[#allocation11 + $0x18] sm:$0xff] %v1114
          %1123 = vst [vmem:[#allocation11 + $0x20] sm:$0xff] %v1115
          %1124 = vst [vmem:[#allocation11 + $0x28] sm:$0xff] %v1116
          %1125 = vst [vmem:[#allocation11 + $0x30] sm:$0xff] %v1117
          %1126 = vst [vmem:[#allocation11 + $0x38] sm:$0xff] %v1118
        $region64: #{tpu_custom_call.1} parent=39 // pred_fallthru
          _
        // Predicated region
        $region65: #{tpu_custom_call.1} parent=39 // pred_check
          %p1127 = pneg %p174
        $region66: #{tpu_custom_call.1} parent=39 // pred_check_branch
          %1129 = sbr.rel (%p1127) target = $region68
        $region67: #{tpu_custom_call.1} parent=39 // pred_region
          %s1130 = smul.u32 4, %s28
          %s1132 = ssub.s32 1024, 1024
          %1133 = vsyncadd [#allocation5], %s1132
          %s1134 = smul.addr %s1130, 2
          %s1135 = smul.addr %s1134, 128
          %s1136 = scalar_lea.hbm %s5, %s1135
          %s1137 = sshll.u32 [#allocation11], 4
          %s1138 = int_to_ptr.vmem [resolvable:$true] %s1137
          %1143 = dma.vmem_to_hbm [thread:$0]  %s1138, 1024, %s1136, [#allocation5], 256, 256, 16
        $region68: #{tpu_custom_call.1} parent=39 // pred_fallthru
          _
        // Predicated region
        $region69: #{tpu_custom_call.1} parent=39 // pred_check
          %p1144 = pneg %p174
        $region70: #{tpu_custom_call.1} parent=39 // pred_check_branch
          %1146 = sbr.rel (%p1144) target = $region72
        $region71: #{tpu_custom_call.1} parent=39 // pred_region
          %1147 = dma.done [#allocation5], 1024
        $region72: #{tpu_custom_call.1} parent=39 // pred_fallthru
          _
      $region40: #{tpu_custom_call.1} parent=5 // pred_fallthru
        _
      %p1148 = scmp.le.s32.totalorder 2, %s19
      // Predicated region
      $region73: #{tpu_custom_call.1} parent=5 // pred_check
        %p1149 = pneg %p1148
      $region74: #{tpu_custom_call.1} parent=5 // pred_check_branch
        %1151 = sbr.rel (%p1149) target = $region76
      $region75: #{tpu_custom_call.1} parent=5 // pred_region
        %s1152 = ssub.s32 %s19, 2
      $region76: #{tpu_custom_call.1} parent=5 // pred_fallthru
        _
    $region6: #{tpu_custom_call.1} parent=1 // loop_footer
      %s23 = sadd.s32 1, %s19
    $region7: #{tpu_custom_call.1} parent=1 // loop_footer_branch
      %18 = sbr.rel target = $region3
    $region8: #{tpu_custom_call.1} parent=1 // loop_exit
      _
    %1153 = vsyncpa [#allocation4], 1
    %s1154 = scalar_lea.sflag [#allocation4], 1
    %1155 = vsyncpa %s1154, 1
    %1156 = vsyncpa [#allocation7], 1
    %s1157 = scalar_lea.sflag [#allocation7], 1
    %1158 = vsyncpa %s1157, 1
    %1159 = vsyncpa [#allocation10], 1
    %s1160 = scalar_lea.sflag [#allocation10], 1
    %1161 = vsyncpa %s1160, 1
    %1162 = vsyncpa [#allocation5], 1
    %s1163 = scalar_lea.sflag [#allocation5], 1
    %1164 = vsyncpa %s1163, 1

</llo_original>
